<compile_context>
chip_gen: v7x
topology: tpu7x:2x2x1
jax: 0.10.0
libtpu: 0.0.40
codegen_flags: <defaults>
</compile_context>

<pallas_src>
import functools
import math

import jax
import jax.numpy as jnp
from jax.experimental import pallas as pl
from jax.experimental.pallas import tpu as pltpu


def _quantile_kernel(x_ref, o_ref, *, n, k_lo, k_hi, frac):
    # x_ref block: (N, TILE_D) f32;  o_ref block: (1, TILE_D)
    x = x_ref[...]                                             # (N, TILE_D)
    d = x.shape[1]
    row_idx = jax.lax.broadcasted_iota(jnp.int32, (n, d), 0)   # row index per elem

    # rank[i, c] = position of x[i, c] in a stable sort of column c.
    # N is static and small: full unroll so compares / loads / adds co-issue.
    rank = jnp.zeros((n, d), jnp.int32)
    for j in range(n):
        xj = x_ref[pl.ds(j, 1), :]                             # (1, TILE_D), row j
        # Fused predicate: strictly-less OR equal-with-lower-original-index
        # (stable tie break -> rank is a strict permutation per column).
        pred = (xj < x) | ((xj == x) & (row_idx > j))
        rank = rank + pred.astype(jnp.int32)

    if k_lo == k_hi:
        # q*(N-1) lands exactly on an order statistic: one masked selection.
        sel = jnp.where(rank == k_lo, x, jnp.float32(0.0))
        o_ref[...] = jnp.sum(sel, axis=0, keepdims=True).astype(o_ref.dtype)
    else:
        # Linear interpolation folded into a single weighted sublane reduction.
        w = (jnp.where(rank == k_lo, jnp.float32(1.0 - frac), jnp.float32(0.0))
             + jnp.where(rank == k_hi, jnp.float32(frac), jnp.float32(0.0)))
        o_ref[...] = jnp.sum(w * x, axis=0, keepdims=True).astype(o_ref.dtype)


def quantile_op(x, q, *, tile_d=512):
    """Equivalent of QuantileOP(q).forward(x): torch.quantile(x, q, dim=-2)."""
    B, N, D = x.shape
    idx = q * (N - 1)
    k_lo = int(math.floor(idx))
    k_hi = int(math.ceil(idx))
    frac = float(idx - k_lo)

    # Lane-dense layout: fold (B, D) into the lane axis; every column is an
    # independent quantile problem over the N rows.
    cols = B * D
    x2 = jnp.transpose(x, (1, 0, 2)).reshape(N, cols)

    # Pad lanes to a multiple of 128 (lane width).  Padding columns are
    # independent garbage and sliced off afterwards.
    cols_pad = ((cols + 127) // 128) * 128
    if cols_pad != cols:
        x2 = jnp.pad(x2, ((0, 0), (0, cols_pad - cols)))

    # Bound the live compute slab: keep N * TILE_D <= ~16K f32 elements so
    # x + rank + compare temporaries fit in vregs without spilling; pick the
    # largest 128-multiple tile that evenly covers the padded lane extent.
    max_tile = max(128, min(int(tile_d), ((16384 // max(N, 1)) // 128) * 128))
    tile = 128
    for cand in range(max_tile, 127, -128):
        if cols_pad % cand == 0:
            tile = cand
            break

    kernel = functools.partial(
        _quantile_kernel, n=N, k_lo=k_lo, k_hi=k_hi, frac=frac
    )

    out = pl.pallas_call(
        kernel,
        out_shape=jax.ShapeDtypeStruct((1, cols_pad), x.dtype),
        grid=(cols_pad // tile,),
        in_specs=[pl.BlockSpec((N, tile), lambda i: (0, i))],
        out_specs=pl.BlockSpec((1, tile), lambda i: (0, i)),
        compiler_params=pltpu.CompilerParams(
            dimension_semantics=("parallel",),
            vmem_limit_bytes=32 * 1024 * 1024,  # safe for v7x's 64 MiB VMEM
        ),
    )(x2)

    return out[0, :cols].reshape(B, D)


if __name__ == "__main__":
    # QuantileOP has no learnable weights; its only "parameter" is q.
    key = jax.random.PRNGKey(0)
    B, N, D = 2, 16, 32
    x = jax.random.normal(key, (B, N, D), dtype=jnp.float32)

    # Interpolating quantile (k_lo != k_hi): q=0.7, idx = 10.5.
    q = 0.7
    out = jax.block_until_ready(quantile_op(x, q))
    ref = jnp.quantile(x, q, axis=-2)
    assert out.shape == (B, D), out.shape
    assert jnp.allclose(out, ref, atol=1e-5, rtol=1e-5), (out, ref)

    # Exact order-statistic path (k_lo == k_hi): q=1.0 -> max over points.
    out_max = jax.block_until_ready(quantile_op(x, 1.0))
    ref_max = jnp.quantile(x, 1.0, axis=-2)
    assert jnp.allclose(out_max, ref_max, atol=1e-5, rtol=1e-5)

    # Non-128-multiple width + multi-tile grid (exercises padding + grid > 1).
    x2 = jax.random.normal(jax.random.PRNGKey(1), (3, 16, 200), dtype=jnp.float32)
    out2 = jax.block_until_ready(quantile_op(x2, 0.3))
    ref2 = jnp.quantile(x2, 0.3, axis=-2)
    assert out2.shape == (3, 200), out2.shape
    assert jnp.allclose(out2, ref2, atol=1e-5, rtol=1e-5)

    print("KERNEL_OK")
</pallas_src>

<mosaic_0001>
module attributes {stable_mosaic.version = 11 : i64} {
  func.func @_quantile_kernel(%arg0: i32, %arg1: memref<16x128xf32, #tpu.memory_space<vmem>>, %arg2: memref<1x128xf32, #tpu.memory_space<vmem>>) attributes {dimension_semantics = [#tpu.dimension_semantics<parallel>], iteration_bounds = array<i64: 1>, scalar_prefetch = 0 : i64, scratch_operands = 0 : i64, tpu.core_type = #tpu.core_type<tc>, window_params = [{transform_indices = @transform_0, window_bounds = array<i64: 16, 128>}, {transform_indices = @transform_1, window_bounds = array<i64: 1, 128>}]} {
    %c0 = arith.constant 0 : index
    %c0_0 = arith.constant 0 : index
    %0 = vector.load %arg1[%c0, %c0_0] : memref<16x128xf32, #tpu.memory_space<vmem>>, vector<16x128xf32>
    %1 = tpu.iota {dimensions = array<i32: 0>} : vector<16x128xi32>
    %c0_i32 = arith.constant 0 : i32
    %2 = vector.broadcast %c0_i32 : i32 to vector<16x128xi32>
    %c0_1 = arith.constant 0 : index
    %c0_2 = arith.constant 0 : index
    %3 = vector.load %arg1[%c0_1, %c0_2] : memref<16x128xf32, #tpu.memory_space<vmem>>, vector<1x128xf32>
    %4 = vector.broadcast %3 : vector<1x128xf32> to vector<16x128xf32>
    %5 = arith.cmpf olt, %4, %0 : vector<16x128xf32>
    %6 = vector.broadcast %3 : vector<1x128xf32> to vector<16x128xf32>
    %7 = arith.cmpf oeq, %6, %0 : vector<16x128xf32>
    %c0_i32_3 = arith.constant 0 : i32
    %8 = vector.broadcast %c0_i32_3 : i32 to vector<16x128xi32>
    %9 = arith.cmpi sgt, %1, %8 : vector<16x128xi32>
    %10 = arith.andi %7, %9 : vector<16x128xi1>
    %11 = arith.ori %5, %10 : vector<16x128xi1>
    %12 = arith.extui %11 : vector<16x128xi1> to vector<16x128xi32>
    %13 = arith.addi %2, %12 : vector<16x128xi32>
    %c1 = arith.constant 1 : index
    %c0_4 = arith.constant 0 : index
    %14 = vector.load %arg1[%c1, %c0_4] : memref<16x128xf32, #tpu.memory_space<vmem>>, vector<1x128xf32>
    %15 = vector.broadcast %14 : vector<1x128xf32> to vector<16x128xf32>
    %16 = arith.cmpf olt, %15, %0 : vector<16x128xf32>
    %17 = vector.broadcast %14 : vector<1x128xf32> to vector<16x128xf32>
    %18 = arith.cmpf oeq, %17, %0 : vector<16x128xf32>
    %c1_i32 = arith.constant 1 : i32
    %19 = vector.broadcast %c1_i32 : i32 to vector<16x128xi32>
    %20 = arith.cmpi sgt, %1, %19 : vector<16x128xi32>
    %21 = arith.andi %18, %20 : vector<16x128xi1>
    %22 = arith.ori %16, %21 : vector<16x128xi1>
    %23 = arith.extui %22 : vector<16x128xi1> to vector<16x128xi32>
    %24 = arith.addi %13, %23 : vector<16x128xi32>
    %c2 = arith.constant 2 : index
    %c0_5 = arith.constant 0 : index
    %25 = vector.load %arg1[%c2, %c0_5] : memref<16x128xf32, #tpu.memory_space<vmem>>, vector<1x128xf32>
    %26 = vector.broadcast %25 : vector<1x128xf32> to vector<16x128xf32>
    %27 = arith.cmpf olt, %26, %0 : vector<16x128xf32>
    %28 = vector.broadcast %25 : vector<1x128xf32> to vector<16x128xf32>
    %29 = arith.cmpf oeq, %28, %0 : vector<16x128xf32>
    %c2_i32 = arith.constant 2 : i32
    %30 = vector.broadcast %c2_i32 : i32 to vector<16x128xi32>
    %31 = arith.cmpi sgt, %1, %30 : vector<16x128xi32>
    %32 = arith.andi %29, %31 : vector<16x128xi1>
    %33 = arith.ori %27, %32 : vector<16x128xi1>
    %34 = arith.extui %33 : vector<16x128xi1> to vector<16x128xi32>
    %35 = arith.addi %24, %34 : vector<16x128xi32>
    %c3 = arith.constant 3 : index
    %c0_6 = arith.constant 0 : index
    %36 = vector.load %arg1[%c3, %c0_6] : memref<16x128xf32, #tpu.memory_space<vmem>>, vector<1x128xf32>
    %37 = vector.broadcast %36 : vector<1x128xf32> to vector<16x128xf32>
    %38 = arith.cmpf olt, %37, %0 : vector<16x128xf32>
    %39 = vector.broadcast %36 : vector<1x128xf32> to vector<16x128xf32>
    %40 = arith.cmpf oeq, %39, %0 : vector<16x128xf32>
    %c3_i32 = arith.constant 3 : i32
    %41 = vector.broadcast %c3_i32 : i32 to vector<16x128xi32>
    %42 = arith.cmpi sgt, %1, %41 : vector<16x128xi32>
    %43 = arith.andi %40, %42 : vector<16x128xi1>
    %44 = arith.ori %38, %43 : vector<16x128xi1>
    %45 = arith.extui %44 : vector<16x128xi1> to vector<16x128xi32>
    %46 = arith.addi %35, %45 : vector<16x128xi32>
    %c4 = arith.constant 4 : index
    %c0_7 = arith.constant 0 : index
    %47 = vector.load %arg1[%c4, %c0_7] : memref<16x128xf32, #tpu.memory_space<vmem>>, vector<1x128xf32>
    %48 = vector.broadcast %47 : vector<1x128xf32> to vector<16x128xf32>
    %49 = arith.cmpf olt, %48, %0 : vector<16x128xf32>
    %50 = vector.broadcast %47 : vector<1x128xf32> to vector<16x128xf32>
    %51 = arith.cmpf oeq, %50, %0 : vector<16x128xf32>
    %c4_i32 = arith.constant 4 : i32
    %52 = vector.broadcast %c4_i32 : i32 to vector<16x128xi32>
    %53 = arith.cmpi sgt, %1, %52 : vector<16x128xi32>
    %54 = arith.andi %51, %53 : vector<16x128xi1>
    %55 = arith.ori %49, %54 : vector<16x128xi1>
    %56 = arith.extui %55 : vector<16x128xi1> to vector<16x128xi32>
    %57 = arith.addi %46, %56 : vector<16x128xi32>
    %c5 = arith.constant 5 : index
    %c0_8 = arith.constant 0 : index
    %58 = vector.load %arg1[%c5, %c0_8] : memref<16x128xf32, #tpu.memory_space<vmem>>, vector<1x128xf32>
    %59 = vector.broadcast %58 : vector<1x128xf32> to vector<16x128xf32>
    %60 = arith.cmpf olt, %59, %0 : vector<16x128xf32>
    %61 = vector.broadcast %58 : vector<1x128xf32> to vector<16x128xf32>
    %62 = arith.cmpf oeq, %61, %0 : vector<16x128xf32>
    %c5_i32 = arith.constant 5 : i32
    %63 = vector.broadcast %c5_i32 : i32 to vector<16x128xi32>
    %64 = arith.cmpi sgt, %1, %63 : vector<16x128xi32>
    %65 = arith.andi %62, %64 : vector<16x128xi1>
    %66 = arith.ori %60, %65 : vector<16x128xi1>
    %67 = arith.extui %66 : vector<16x128xi1> to vector<16x128xi32>
    %68 = arith.addi %57, %67 : vector<16x128xi32>
    %c6 = arith.constant 6 : index
    %c0_9 = arith.constant 0 : index
    %69 = vector.load %arg1[%c6, %c0_9] : memref<16x128xf32, #tpu.memory_space<vmem>>, vector<1x128xf32>
    %70 = vector.broadcast %69 : vector<1x128xf32> to vector<16x128xf32>
    %71 = arith.cmpf olt, %70, %0 : vector<16x128xf32>
    %72 = vector.broadcast %69 : vector<1x128xf32> to vector<16x128xf32>
    %73 = arith.cmpf oeq, %72, %0 : vector<16x128xf32>
    %c6_i32 = arith.constant 6 : i32
    %74 = vector.broadcast %c6_i32 : i32 to vector<16x128xi32>
    %75 = arith.cmpi sgt, %1, %74 : vector<16x128xi32>
    %76 = arith.andi %73, %75 : vector<16x128xi1>
    %77 = arith.ori %71, %76 : vector<16x128xi1>
    %78 = arith.extui %77 : vector<16x128xi1> to vector<16x128xi32>
    %79 = arith.addi %68, %78 : vector<16x128xi32>
    %c7 = arith.constant 7 : index
    %c0_10 = arith.constant 0 : index
    %80 = vector.load %arg1[%c7, %c0_10] : memref<16x128xf32, #tpu.memory_space<vmem>>, vector<1x128xf32>
    %81 = vector.broadcast %80 : vector<1x128xf32> to vector<16x128xf32>
    %82 = arith.cmpf olt, %81, %0 : vector<16x128xf32>
    %83 = vector.broadcast %80 : vector<1x128xf32> to vector<16x128xf32>
    %84 = arith.cmpf oeq, %83, %0 : vector<16x128xf32>
    %c7_i32 = arith.constant 7 : i32
    %85 = vector.broadcast %c7_i32 : i32 to vector<16x128xi32>
    %86 = arith.cmpi sgt, %1, %85 : vector<16x128xi32>
    %87 = arith.andi %84, %86 : vector<16x128xi1>
    %88 = arith.ori %82, %87 : vector<16x128xi1>
    %89 = arith.extui %88 : vector<16x128xi1> to vector<16x128xi32>
    %90 = arith.addi %79, %89 : vector<16x128xi32>
    %c8 = arith.constant 8 : index
    %c0_11 = arith.constant 0 : index
    %91 = vector.load %arg1[%c8, %c0_11] : memref<16x128xf32, #tpu.memory_space<vmem>>, vector<1x128xf32>
    %92 = vector.broadcast %91 : vector<1x128xf32> to vector<16x128xf32>
    %93 = arith.cmpf olt, %92, %0 : vector<16x128xf32>
    %94 = vector.broadcast %91 : vector<1x128xf32> to vector<16x128xf32>
    %95 = arith.cmpf oeq, %94, %0 : vector<16x128xf32>
    %c8_i32 = arith.constant 8 : i32
    %96 = vector.broadcast %c8_i32 : i32 to vector<16x128xi32>
    %97 = arith.cmpi sgt, %1, %96 : vector<16x128xi32>
    %98 = arith.andi %95, %97 : vector<16x128xi1>
    %99 = arith.ori %93, %98 : vector<16x128xi1>
    %100 = arith.extui %99 : vector<16x128xi1> to vector<16x128xi32>
    %101 = arith.addi %90, %100 : vector<16x128xi32>
    %c9 = arith.constant 9 : index
    %c0_12 = arith.constant 0 : index
    %102 = vector.load %arg1[%c9, %c0_12] : memref<16x128xf32, #tpu.memory_space<vmem>>, vector<1x128xf32>
    %103 = vector.broadcast %102 : vector<1x128xf32> to vector<16x128xf32>
    %104 = arith.cmpf olt, %103, %0 : vector<16x128xf32>
    %105 = vector.broadcast %102 : vector<1x128xf32> to vector<16x128xf32>
    %106 = arith.cmpf oeq, %105, %0 : vector<16x128xf32>
    %c9_i32 = arith.constant 9 : i32
    %107 = vector.broadcast %c9_i32 : i32 to vector<16x128xi32>
    %108 = arith.cmpi sgt, %1, %107 : vector<16x128xi32>
    %109 = arith.andi %106, %108 : vector<16x128xi1>
    %110 = arith.ori %104, %109 : vector<16x128xi1>
    %111 = arith.extui %110 : vector<16x128xi1> to vector<16x128xi32>
    %112 = arith.addi %101, %111 : vector<16x128xi32>
    %c10 = arith.constant 10 : index
    %c0_13 = arith.constant 0 : index
    %113 = vector.load %arg1[%c10, %c0_13] : memref<16x128xf32, #tpu.memory_space<vmem>>, vector<1x128xf32>
    %114 = vector.broadcast %113 : vector<1x128xf32> to vector<16x128xf32>
    %115 = arith.cmpf olt, %114, %0 : vector<16x128xf32>
    %116 = vector.broadcast %113 : vector<1x128xf32> to vector<16x128xf32>
    %117 = arith.cmpf oeq, %116, %0 : vector<16x128xf32>
    %c10_i32 = arith.constant 10 : i32
    %118 = vector.broadcast %c10_i32 : i32 to vector<16x128xi32>
    %119 = arith.cmpi sgt, %1, %118 : vector<16x128xi32>
    %120 = arith.andi %117, %119 : vector<16x128xi1>
    %121 = arith.ori %115, %120 : vector<16x128xi1>
    %122 = arith.extui %121 : vector<16x128xi1> to vector<16x128xi32>
    %123 = arith.addi %112, %122 : vector<16x128xi32>
    %c11 = arith.constant 11 : index
    %c0_14 = arith.constant 0 : index
    %124 = vector.load %arg1[%c11, %c0_14] : memref<16x128xf32, #tpu.memory_space<vmem>>, vector<1x128xf32>
    %125 = vector.broadcast %124 : vector<1x128xf32> to vector<16x128xf32>
    %126 = arith.cmpf olt, %125, %0 : vector<16x128xf32>
    %127 = vector.broadcast %124 : vector<1x128xf32> to vector<16x128xf32>
    %128 = arith.cmpf oeq, %127, %0 : vector<16x128xf32>
    %c11_i32 = arith.constant 11 : i32
    %129 = vector.broadcast %c11_i32 : i32 to vector<16x128xi32>
    %130 = arith.cmpi sgt, %1, %129 : vector<16x128xi32>
    %131 = arith.andi %128, %130 : vector<16x128xi1>
    %132 = arith.ori %126, %131 : vector<16x128xi1>
    %133 = arith.extui %132 : vector<16x128xi1> to vector<16x128xi32>
    %134 = arith.addi %123, %133 : vector<16x128xi32>
    %c12 = arith.constant 12 : index
    %c0_15 = arith.constant 0 : index
    %135 = vector.load %arg1[%c12, %c0_15] : memref<16x128xf32, #tpu.memory_space<vmem>>, vector<1x128xf32>
    %136 = vector.broadcast %135 : vector<1x128xf32> to vector<16x128xf32>
    %137 = arith.cmpf olt, %136, %0 : vector<16x128xf32>
    %138 = vector.broadcast %135 : vector<1x128xf32> to vector<16x128xf32>
    %139 = arith.cmpf oeq, %138, %0 : vector<16x128xf32>
    %c12_i32 = arith.constant 12 : i32
    %140 = vector.broadcast %c12_i32 : i32 to vector<16x128xi32>
    %141 = arith.cmpi sgt, %1, %140 : vector<16x128xi32>
    %142 = arith.andi %139, %141 : vector<16x128xi1>
    %143 = arith.ori %137, %142 : vector<16x128xi1>
    %144 = arith.extui %143 : vector<16x128xi1> to vector<16x128xi32>
    %145 = arith.addi %134, %144 : vector<16x128xi32>
    %c13 = arith.constant 13 : index
    %c0_16 = arith.constant 0 : index
    %146 = vector.load %arg1[%c13, %c0_16] : memref<16x128xf32, #tpu.memory_space<vmem>>, vector<1x128xf32>
    %147 = vector.broadcast %146 : vector<1x128xf32> to vector<16x128xf32>
    %148 = arith.cmpf olt, %147, %0 : vector<16x128xf32>
    %149 = vector.broadcast %146 : vector<1x128xf32> to vector<16x128xf32>
    %150 = arith.cmpf oeq, %149, %0 : vector<16x128xf32>
    %c13_i32 = arith.constant 13 : i32
    %151 = vector.broadcast %c13_i32 : i32 to vector<16x128xi32>
    %152 = arith.cmpi sgt, %1, %151 : vector<16x128xi32>
    %153 = arith.andi %150, %152 : vector<16x128xi1>
    %154 = arith.ori %148, %153 : vector<16x128xi1>
    %155 = arith.extui %154 : vector<16x128xi1> to vector<16x128xi32>
    %156 = arith.addi %145, %155 : vector<16x128xi32>
    %c14 = arith.constant 14 : index
    %c0_17 = arith.constant 0 : index
    %157 = vector.load %arg1[%c14, %c0_17] : memref<16x128xf32, #tpu.memory_space<vmem>>, vector<1x128xf32>
    %158 = vector.broadcast %157 : vector<1x128xf32> to vector<16x128xf32>
    %159 = arith.cmpf olt, %158, %0 : vector<16x128xf32>
    %160 = vector.broadcast %157 : vector<1x128xf32> to vector<16x128xf32>
    %161 = arith.cmpf oeq, %160, %0 : vector<16x128xf32>
    %c14_i32 = arith.constant 14 : i32
    %162 = vector.broadcast %c14_i32 : i32 to vector<16x128xi32>
    %163 = arith.cmpi sgt, %1, %162 : vector<16x128xi32>
    %164 = arith.andi %161, %163 : vector<16x128xi1>
    %165 = arith.ori %159, %164 : vector<16x128xi1>
    %166 = arith.extui %165 : vector<16x128xi1> to vector<16x128xi32>
    %167 = arith.addi %156, %166 : vector<16x128xi32>
    %c15 = arith.constant 15 : index
    %c0_18 = arith.constant 0 : index
    %168 = vector.load %arg1[%c15, %c0_18] : memref<16x128xf32, #tpu.memory_space<vmem>>, vector<1x128xf32>
    %169 = vector.broadcast %168 : vector<1x128xf32> to vector<16x128xf32>
    %170 = arith.cmpf olt, %169, %0 : vector<16x128xf32>
    %171 = vector.broadcast %168 : vector<1x128xf32> to vector<16x128xf32>
    %172 = arith.cmpf oeq, %171, %0 : vector<16x128xf32>
    %c15_i32 = arith.constant 15 : i32
    %173 = vector.broadcast %c15_i32 : i32 to vector<16x128xi32>
    %174 = arith.cmpi sgt, %1, %173 : vector<16x128xi32>
    %175 = arith.andi %172, %174 : vector<16x128xi1>
    %176 = arith.ori %170, %175 : vector<16x128xi1>
    %177 = arith.extui %176 : vector<16x128xi1> to vector<16x128xi32>
    %178 = arith.addi %167, %177 : vector<16x128xi32>
    %c10_i32_19 = arith.constant 10 : i32
    %179 = vector.broadcast %c10_i32_19 : i32 to vector<16x128xi32>
    %180 = arith.cmpi eq, %178, %179 : vector<16x128xi32>
    %cst = arith.constant 5.000000e-01 : f32
    %cst_20 = arith.constant 0.000000e+00 : f32
    %181 = vector.broadcast %cst : f32 to vector<16x128xf32>
    %182 = vector.broadcast %cst_20 : f32 to vector<16x128xf32>
    %183 = arith.select %180, %181, %182 : vector<16x128xi1>, vector<16x128xf32>
    %c11_i32_21 = arith.constant 11 : i32
    %184 = vector.broadcast %c11_i32_21 : i32 to vector<16x128xi32>
    %185 = arith.cmpi eq, %178, %184 : vector<16x128xi32>
    %cst_22 = arith.constant 5.000000e-01 : f32
    %cst_23 = arith.constant 0.000000e+00 : f32
    %186 = vector.broadcast %cst_22 : f32 to vector<16x128xf32>
    %187 = vector.broadcast %cst_23 : f32 to vector<16x128xf32>
    %188 = arith.select %185, %186, %187 : vector<16x128xi1>, vector<16x128xf32>
    %189 = arith.addf %183, %188 : vector<16x128xf32>
    %190 = arith.mulf %189, %0 : vector<16x128xf32>
    %cst_24 = arith.constant dense<0.000000e+00> : vector<128xf32>
    %191 = vector.multi_reduction <add>, %190, %cst_24 [0] : vector<16x128xf32> to vector<128xf32>
    %192 = vector.shape_cast %191 : vector<128xf32> to vector<1x128xf32>
    %c0_25 = arith.constant 0 : index
    %c0_26 = arith.constant 0 : index
    %193 = vector.load %arg2[%c0_25, %c0_26] : memref<1x128xf32, #tpu.memory_space<vmem>>, vector<1x128xf32>
    tpu.vector_store %arg2[%c0_25, %c0_26], %192 {strides = array<i32>} : memref<1x128xf32, #tpu.memory_space<vmem>>, vector<1x128xf32>,
    return
  }
  func.func @transform_0(%arg0: i32) -> (i32, i32) {
    %c0_i32 = arith.constant 0 : i32
    %c0_i32_0 = arith.constant 0 : i32
    return %c0_i32, %arg0 : i32, i32
  }
  func.func @transform_1(%arg0: i32) -> (i32, i32) {
    %c0_i32 = arith.constant 0 : i32
    %c0_i32_0 = arith.constant 0 : i32
    return %c0_i32, %arg0 : i32, i32
  }
}

</mosaic_0001>

<llo_original>
// kernel: tpu_custom_call.1
$region0: #{tpu_custom_call.1}
  #allocation0 [shape = 'u32[]', space=smem, size = 0x4, offset = 0x4, fixed_abs, tag = 'smem constant byte address 0x4 - core index']
  #allocation1 [shape = 'u32[144,128]{1,0:T(1,128)}', space=vmem, size = 0x12000, scoped, tag = 'internal scratch']
  %s0 = inlined_call_operand.hbm [shape: f32[16,128], index: 0, kind: input, shape index: {}]
  %s1 = inlined_call_operand.hbm [shape: f32[1,128], index: 1, kind: output, shape index: {}]
  %s2 = sld [smem:[#allocation0]]
  $region18: #{tpu_custom_call.1} parent=0
    _
  %s4 = ssub.s32 1, %s2
  %s5 = scalar_select 0, %s4, %s2
  $region1: #{tpu_custom_call.1} parent=0
    #allocation2 [shape = 'u8[8192]{0}', space=vmem, size = 0x2000, scoped, tag = 'input window, operand 0, single buffered']
    #allocation3 [shape = 's32[1]{0}', space=sflag, size = 0x4, scoped, tag = 'scoped memory for tpu_custom_call.1']
    #allocation4 [shape = 's32[1]{0}', space=sflag, size = 0x4, scoped, tag = 'scoped memory for tpu_custom_call.1']
    #allocation5 [shape = 'u8[512]{0}', space=vmem, size = 0x400, scoped, tag = 'output window, operand 0, single buffered']
    %6 = vsyncpa [#allocation3], 0
    %7 = vsyncpa [#allocation4], 0
    // Predicated region
    $region2: #{tpu_custom_call.1} parent=1 // pred_check
      _
    $region3: #{tpu_custom_call.1} parent=1 // pred_check_branch
      %9 = sbr.rel (0) target = $region5
    $region4: #{tpu_custom_call.1} parent=1 // pred_region
      %s11 = ssub.s32 256, 256
      %12 = vsyncadd [#allocation3], %s11
      %s13 = sshll.u32 [#allocation2], 4
      %s14 = int_to_ptr.vmem [resolvable:$true] %s13
      %19 = dma.hbm_to_vmem [thread:$0]  %s0, 256, %s14, [#allocation3], 128, 128, 8
    $region5: #{tpu_custom_call.1} parent=1 // pred_fallthru
      _
    // Predicated region
    $region6: #{tpu_custom_call.1} parent=1 // pred_check
      _
    $region7: #{tpu_custom_call.1} parent=1 // pred_check_branch
      %21 = sbr.rel (0) target = $region9
    $region8: #{tpu_custom_call.1} parent=1 // pred_region
      %22 = dma.done [#allocation3], 256
    $region9: #{tpu_custom_call.1} parent=1 // pred_fallthru
      _
    %v23 = vld [vmem:[#allocation2] sm:$0xff]
    %v24 = vld [vmem:[#allocation2 + $0x8] sm:$0xff]
    %v25 = vlaneseq
    %v26 = vshrl.u32 %v25, 7
    %v27 = vadd.s32 %v26, 8
    %v28 = vld [vmem:[#allocation2] sm:$0x1]
    %v29 = vlaneseq
    %v30 = vshrl.u32 %v29, 7
    %v31 = vsub.s32 0, %v30
    %v32 = vrot.slane %v28, %v31
    %vm33 = vcmp.lt.f32.partialorder %v32, %v23
    %vm34 = vcmp.lt.f32.partialorder %v32, %v24
    %vm35 = vcmp.eq.f32.partialorder %v32, %v23
    %vm36 = vcmp.eq.f32.partialorder %v32, %v24
    %vm37 = vcmp.gt.s32.totalorder %v26, 0
    %vm38 = vcmp.gt.s32.totalorder %v27, 0
    %vm39 = vmand %vm35, %vm37
    %vm40 = vmand %vm36, %vm38
    %vm41 = vmor %vm33, %vm39
    %vm42 = vmor %vm34, %vm40
    %v43 = vsel %vm41, 1, 0
    %v44 = vsel %vm42, 1, 0
    %v45 = vld [vmem:[#allocation2 + $0x1] sm:$0x1]
    %v46 = vlaneseq
    %v47 = vshrl.u32 %v46, 7
    %v48 = vsub.s32 0, %v47
    %v49 = vrot.slane %v45, %v48
    %vm50 = vcmp.lt.f32.partialorder %v49, %v23
    %vm51 = vcmp.lt.f32.partialorder %v49, %v24
    %vm52 = vcmp.eq.f32.partialorder %v49, %v23
    %vm53 = vcmp.eq.f32.partialorder %v49, %v24
    %vm54 = vcmp.gt.s32.totalorder %v26, 1
    %vm55 = vcmp.gt.s32.totalorder %v27, 1
    %vm56 = vmand %vm52, %vm54
    %vm57 = vmand %vm53, %vm55
    %vm58 = vmor %vm50, %vm56
    %vm59 = vmor %vm51, %vm57
    %v60 = vsel %vm58, 1, 0
    %v61 = vsel %vm59, 1, 0
    %v62 = vadd.s32 %v43, %v60
    %v63 = vadd.s32 %v44, %v61
    %v64 = vld [vmem:[#allocation2 + $0x2] sm:$0x1]
    %v65 = vlaneseq
    %v66 = vshrl.u32 %v65, 7
    %v67 = vsub.s32 0, %v66
    %v68 = vrot.slane %v64, %v67
    %vm69 = vcmp.lt.f32.partialorder %v68, %v23
    %vm70 = vcmp.lt.f32.partialorder %v68, %v24
    %vm71 = vcmp.eq.f32.partialorder %v68, %v23
    %vm72 = vcmp.eq.f32.partialorder %v68, %v24
    %vm73 = vcmp.gt.s32.totalorder %v26, 2
    %vm74 = vcmp.gt.s32.totalorder %v27, 2
    %vm75 = vmand %vm71, %vm73
    %vm76 = vmand %vm72, %vm74
    %vm77 = vmor %vm69, %vm75
    %vm78 = vmor %vm70, %vm76
    %v79 = vsel %vm77, 1, 0
    %v80 = vsel %vm78, 1, 0
    %v81 = vadd.s32 %v62, %v79
    %v82 = vadd.s32 %v63, %v80
    %v83 = vld [vmem:[#allocation2 + $0x3] sm:$0x1]
    %v84 = vlaneseq
    %v85 = vshrl.u32 %v84, 7
    %v86 = vsub.s32 0, %v85
    %v87 = vrot.slane %v83, %v86
    %vm88 = vcmp.lt.f32.partialorder %v87, %v23
    %vm89 = vcmp.lt.f32.partialorder %v87, %v24
    %vm90 = vcmp.eq.f32.partialorder %v87, %v23
    %vm91 = vcmp.eq.f32.partialorder %v87, %v24
    %vm92 = vcmp.gt.s32.totalorder %v26, 3
    %vm93 = vcmp.gt.s32.totalorder %v27, 3
    %vm94 = vmand %vm90, %vm92
    %vm95 = vmand %vm91, %vm93
    %vm96 = vmor %vm88, %vm94
    %vm97 = vmor %vm89, %vm95
    %v98 = vsel %vm96, 1, 0
    %v99 = vsel %vm97, 1, 0
    %v100 = vadd.s32 %v81, %v98
    %v101 = vadd.s32 %v82, %v99
    %v102 = vld [vmem:[#allocation2 + $0x4] sm:$0x1]
    %v103 = vlaneseq
    %v104 = vshrl.u32 %v103, 7
    %v105 = vsub.s32 0, %v104
    %v106 = vrot.slane %v102, %v105
    %vm107 = vcmp.lt.f32.partialorder %v106, %v23
    %vm108 = vcmp.lt.f32.partialorder %v106, %v24
    %vm109 = vcmp.eq.f32.partialorder %v106, %v23
    %vm110 = vcmp.eq.f32.partialorder %v106, %v24
    %vm111 = vcmp.gt.s32.totalorder %v26, 4
    %vm112 = vcmp.gt.s32.totalorder %v27, 4
    %vm113 = vmand %vm109, %vm111
    %vm114 = vmand %vm110, %vm112
    %vm115 = vmor %vm107, %vm113
    %vm116 = vmor %vm108, %vm114
    %v117 = vsel %vm115, 1, 0
    %v118 = vsel %vm116, 1, 0
    %v119 = vadd.s32 %v100, %v117
    %v120 = vadd.s32 %v101, %v118
    %v121 = vld [vmem:[#allocation2 + $0x5] sm:$0x1]
    %v122 = vlaneseq
    %v123 = vshrl.u32 %v122, 7
    %v124 = vsub.s32 0, %v123
    %v125 = vrot.slane %v121, %v124
    %vm126 = vcmp.lt.f32.partialorder %v125, %v23
    %vm127 = vcmp.lt.f32.partialorder %v125, %v24
    %vm128 = vcmp.eq.f32.partialorder %v125, %v23
    %vm129 = vcmp.eq.f32.partialorder %v125, %v24
    %vm130 = vcmp.gt.s32.totalorder %v26, 5
    %vm131 = vcmp.gt.s32.totalorder %v27, 5
    %vm132 = vmand %vm128, %vm130
    %vm133 = vmand %vm129, %vm131
    %vm134 = vmor %vm126, %vm132
    %vm135 = vmor %vm127, %vm133
    %v136 = vsel %vm134, 1, 0
    %v137 = vsel %vm135, 1, 0
    %v138 = vadd.s32 %v119, %v136
    %v139 = vadd.s32 %v120, %v137
    %v140 = vld [vmem:[#allocation2 + $0x6] sm:$0x1]
    %v141 = vlaneseq
    %v142 = vshrl.u32 %v141, 7
    %v143 = vsub.s32 0, %v142
    %v144 = vrot.slane %v140, %v143
    %vm145 = vcmp.lt.f32.partialorder %v144, %v23
    %vm146 = vcmp.lt.f32.partialorder %v144, %v24
    %vm147 = vcmp.eq.f32.partialorder %v144, %v23
    %vm148 = vcmp.eq.f32.partialorder %v144, %v24
    %vm149 = vcmp.gt.s32.totalorder %v26, 6
    %vm150 = vcmp.gt.s32.totalorder %v27, 6
    %vm151 = vmand %vm147, %vm149
    %vm152 = vmand %vm148, %vm150
    %vm153 = vmor %vm145, %vm151
    %vm154 = vmor %vm146, %vm152
    %v155 = vsel %vm153, 1, 0
    %v156 = vsel %vm154, 1, 0
    %v157 = vadd.s32 %v138, %v155
    %v158 = vadd.s32 %v139, %v156
    %v159 = vld [vmem:[#allocation2 + $0x7] sm:$0x1]
    %v160 = vlaneseq
    %v161 = vshrl.u32 %v160, 7
    %v162 = vsub.s32 0, %v161
    %v163 = vrot.slane %v159, %v162
    %vm164 = vcmp.lt.f32.partialorder %v163, %v23
    %vm165 = vcmp.lt.f32.partialorder %v163, %v24
    %vm166 = vcmp.eq.f32.partialorder %v163, %v23
    %vm167 = vcmp.eq.f32.partialorder %v163, %v24
    %vm168 = vcmp.gt.s32.totalorder %v26, 7
    %vm169 = vcmp.gt.s32.totalorder %v27, 7
    %vm170 = vmand %vm166, %vm168
    %vm171 = vmand %vm167, %vm169
    %vm172 = vmor %vm164, %vm170
    %vm173 = vmor %vm165, %vm171
    %v174 = vsel %vm172, 1, 0
    %v175 = vsel %vm173, 1, 0
    %v176 = vadd.s32 %v157, %v174
    %v177 = vadd.s32 %v158, %v175
    %v178 = vld [vmem:[#allocation2 + $0x8] sm:$0x1]
    %v179 = vlaneseq
    %v180 = vshrl.u32 %v179, 7
    %v181 = vsub.s32 0, %v180
    %v182 = vrot.slane %v178, %v181
    %vm183 = vcmp.lt.f32.partialorder %v182, %v23
    %vm184 = vcmp.lt.f32.partialorder %v182, %v24
    %vm185 = vcmp.eq.f32.partialorder %v182, %v23
    %vm186 = vcmp.eq.f32.partialorder %v182, %v24
    %vm187 = vcmp.gt.s32.totalorder %v26, 8
    %vm188 = vcmp.gt.s32.totalorder %v27, 8
    %vm189 = vmand %vm185, %vm187
    %vm190 = vmand %vm186, %vm188
    %vm191 = vmor %vm183, %vm189
    %vm192 = vmor %vm184, %vm190
    %v193 = vsel %vm191, 1, 0
    %v194 = vsel %vm192, 1, 0
    %v195 = vadd.s32 %v176, %v193
    %v196 = vadd.s32 %v177, %v194
    %v197 = vld [vmem:[#allocation2 + $0x9] sm:$0x1]
    %v198 = vlaneseq
    %v199 = vshrl.u32 %v198, 7
    %v200 = vsub.s32 0, %v199
    %v201 = vrot.slane %v197, %v200
    %vm202 = vcmp.lt.f32.partialorder %v201, %v23
    %vm203 = vcmp.lt.f32.partialorder %v201, %v24
    %vm204 = vcmp.eq.f32.partialorder %v201, %v23
    %vm205 = vcmp.eq.f32.partialorder %v201, %v24
    %vm206 = vcmp.gt.s32.totalorder %v26, 9
    %vm207 = vcmp.gt.s32.totalorder %v27, 9
    %vm208 = vmand %vm204, %vm206
    %vm209 = vmand %vm205, %vm207
    %vm210 = vmor %vm202, %vm208
    %vm211 = vmor %vm203, %vm209
    %v212 = vsel %vm210, 1, 0
    %v213 = vsel %vm211, 1, 0
    %v214 = vadd.s32 %v195, %v212
    %v215 = vadd.s32 %v196, %v213
    %v216 = vld [vmem:[#allocation2 + $0xa] sm:$0x1]
    %v217 = vlaneseq
    %v218 = vshrl.u32 %v217, 7
    %v219 = vsub.s32 0, %v218
    %v220 = vrot.slane %v216, %v219
    %vm221 = vcmp.lt.f32.partialorder %v220, %v23
    %vm222 = vcmp.lt.f32.partialorder %v220, %v24
    %vm223 = vcmp.eq.f32.partialorder %v220, %v23
    %vm224 = vcmp.eq.f32.partialorder %v220, %v24
    %vm225 = vcmp.gt.s32.totalorder %v26, 10
    %vm226 = vcmp.gt.s32.totalorder %v27, 10
    %vm227 = vmand %vm223, %vm225
    %vm228 = vmand %vm224, %vm226
    %vm229 = vmor %vm221, %vm227
    %vm230 = vmor %vm222, %vm228
    %v231 = vsel %vm229, 1, 0
    %v232 = vsel %vm230, 1, 0
    %v233 = vadd.s32 %v214, %v231
    %v234 = vadd.s32 %v215, %v232
    %v235 = vld [vmem:[#allocation2 + $0xb] sm:$0x1]
    %v236 = vlaneseq
    %v237 = vshrl.u32 %v236, 7
    %v238 = vsub.s32 0, %v237
    %v239 = vrot.slane %v235, %v238
    %vm240 = vcmp.lt.f32.partialorder %v239, %v23
    %vm241 = vcmp.lt.f32.partialorder %v239, %v24
    %vm242 = vcmp.eq.f32.partialorder %v239, %v23
    %vm243 = vcmp.eq.f32.partialorder %v239, %v24
    %vm244 = vcmp.gt.s32.totalorder %v26, 11
    %vm245 = vcmp.gt.s32.totalorder %v27, 11
    %vm246 = vmand %vm242, %vm244
    %vm247 = vmand %vm243, %vm245
    %vm248 = vmor %vm240, %vm246
    %vm249 = vmor %vm241, %vm247
    %v250 = vsel %vm248, 1, 0
    %v251 = vsel %vm249, 1, 0
    %v252 = vadd.s32 %v233, %v250
    %v253 = vadd.s32 %v234, %v251
    %v254 = vld [vmem:[#allocation2 + $0xc] sm:$0x1]
    %v255 = vlaneseq
    %v256 = vshrl.u32 %v255, 7
    %v257 = vsub.s32 0, %v256
    %v258 = vrot.slane %v254, %v257
    %vm259 = vcmp.lt.f32.partialorder %v258, %v23
    %vm260 = vcmp.lt.f32.partialorder %v258, %v24
    %vm261 = vcmp.eq.f32.partialorder %v258, %v23
    %vm262 = vcmp.eq.f32.partialorder %v258, %v24
    %vm263 = vcmp.gt.s32.totalorder %v26, 12
    %vm264 = vcmp.gt.s32.totalorder %v27, 12
    %vm265 = vmand %vm261, %vm263
    %vm266 = vmand %vm262, %vm264
    %vm267 = vmor %vm259, %vm265
    %vm268 = vmor %vm260, %vm266
    %v269 = vsel %vm267, 1, 0
    %v270 = vsel %vm268, 1, 0
    %v271 = vadd.s32 %v252, %v269
    %v272 = vadd.s32 %v253, %v270
    %v273 = vld [vmem:[#allocation2 + $0xd] sm:$0x1]
    %v274 = vlaneseq
    %v275 = vshrl.u32 %v274, 7
    %v276 = vsub.s32 0, %v275
    %v277 = vrot.slane %v273, %v276
    %vm278 = vcmp.lt.f32.partialorder %v277, %v23
    %vm279 = vcmp.lt.f32.partialorder %v277, %v24
    %vm280 = vcmp.eq.f32.partialorder %v277, %v23
    %vm281 = vcmp.eq.f32.partialorder %v277, %v24
    %vm282 = vcmp.gt.s32.totalorder %v26, 13
    %vm283 = vcmp.gt.s32.totalorder %v27, 13
    %vm284 = vmand %vm280, %vm282
    %vm285 = vmand %vm281, %vm283
    %vm286 = vmor %vm278, %vm284
    %vm287 = vmor %vm279, %vm285
    %v288 = vsel %vm286, 1, 0
    %v289 = vsel %vm287, 1, 0
    %v290 = vadd.s32 %v271, %v288
    %v291 = vadd.s32 %v272, %v289
    %v292 = vld [vmem:[#allocation2 + $0xe] sm:$0x1]
    %v293 = vlaneseq
    %v294 = vshrl.u32 %v293, 7
    %v295 = vsub.s32 0, %v294
    %v296 = vrot.slane %v292, %v295
    %vm297 = vcmp.lt.f32.partialorder %v296, %v23
    %vm298 = vcmp.lt.f32.partialorder %v296, %v24
    %vm299 = vcmp.eq.f32.partialorder %v296, %v23
    %vm300 = vcmp.eq.f32.partialorder %v296, %v24
    %vm301 = vcmp.gt.s32.totalorder %v26, 14
    %vm302 = vcmp.gt.s32.totalorder %v27, 14
    %vm303 = vmand %vm299, %vm301
    %vm304 = vmand %vm300, %vm302
    %vm305 = vmor %vm297, %vm303
    %vm306 = vmor %vm298, %vm304
    %v307 = vsel %vm305, 1, 0
    %v308 = vsel %vm306, 1, 0
    %v309 = vadd.s32 %v290, %v307
    %v310 = vadd.s32 %v291, %v308
    %v311 = vld [vmem:[#allocation2 + $0xf] sm:$0x1]
    %v312 = vlaneseq
    %v313 = vshrl.u32 %v312, 7
    %v314 = vsub.s32 0, %v313
    %v315 = vrot.slane %v311, %v314
    %vm316 = vcmp.lt.f32.partialorder %v315, %v23
    %vm317 = vcmp.lt.f32.partialorder %v315, %v24
    %vm318 = vcmp.eq.f32.partialorder %v315, %v23
    %vm319 = vcmp.eq.f32.partialorder %v315, %v24
    %vm320 = vcmp.gt.s32.totalorder %v26, 15
    %vm321 = vcmp.gt.s32.totalorder %v27, 15
    %vm322 = vmand %vm318, %vm320
    %vm323 = vmand %vm319, %vm321
    %vm324 = vmor %vm316, %vm322
    %vm325 = vmor %vm317, %vm323
    %v326 = vsel %vm324, 1, 0
    %v327 = vsel %vm325, 1, 0
    %v328 = vadd.s32 %v309, %v326
    %v329 = vadd.s32 %v310, %v327
    %vm330 = vcmp.eq.s32.totalorder %v328, 10
    %vm331 = vcmp.eq.s32.totalorder %v329, 10
    %v332 = vsel %vm330, 0.5, 0.0
    %v333 = vsel %vm331, 0.5, 0.0
    %vm334 = vcmp.eq.s32.totalorder %v328, 11
    %vm335 = vcmp.eq.s32.totalorder %v329, 11
    %v336 = vsel %vm334, 0.5, 0.0
    %v337 = vsel %vm335, 0.5, 0.0
    %v338 = vadd.f32 %v332, %v336
    %v339 = vadd.f32 %v333, %v337
    %v340 = vmul.f32 %v338, %v23
    %v341 = vmul.f32 %v339, %v24
    %v342 = vadd.f32 %v340, %v341
    %v343 = vrot.slane %v342, 4
    %v344 = vadd.f32 %v342, %v343
    %v345 = vrot.slane %v344, 2
    %v346 = vadd.f32 %v344, %v345
    %v347 = vrot.slane %v346, 1
    %v348 = vadd.f32 %v346, %v347
    %349 = vst [vmem:[#allocation5] sm:$0x1] %v348
    // Predicated region
    $region10: #{tpu_custom_call.1} parent=1 // pred_check
      _
    $region11: #{tpu_custom_call.1} parent=1 // pred_check_branch
      %351 = sbr.rel (0) target = $region13
    $region12: #{tpu_custom_call.1} parent=1 // pred_region
      %s353 = ssub.s32 16, 16
      %354 = vsyncadd [#allocation4], %s353
      %s356 = sshll.u32 [#allocation5], 4
      %s357 = int_to_ptr.vmem [resolvable:$true] %s356
      %359 = dma.vmem_to_hbm [thread:$0]  %s357, 16, %s1, [#allocation4]
    $region13: #{tpu_custom_call.1} parent=1 // pred_fallthru
      _
    // Predicated region
    $region14: #{tpu_custom_call.1} parent=1 // pred_check
      _
    $region15: #{tpu_custom_call.1} parent=1 // pred_check_branch
      %361 = sbr.rel (0) target = $region17
    $region16: #{tpu_custom_call.1} parent=1 // pred_region
      %362 = dma.done [#allocation4], 16
    $region17: #{tpu_custom_call.1} parent=1 // pred_fallthru
      _
    %363 = vsyncpa [#allocation3], 1
    %364 = vsyncpa [#allocation4], 1

</llo_original>
